<compile_context>
chip_gen: v5e
topology: v5e:2x2
jax: 0.10.0
libtpu: 0.0.40
codegen_flags: <defaults>
</compile_context>

<pallas_src>
import math
import functools

import jax
import jax.numpy as jnp
from jax import lax
from jax.experimental import pallas as pl
from jax.experimental.pallas import tpu as pltpu


def _guided_attn_kernel(x_ref, ctx_ref,
                        wq_ref, wkv_ref,
                        bq_ref, bkv_ref,
                        wo_ref, bo_ref,
                        out_ref,
                        *, num_heads: int):
    """One grid step = one batch element (grid axis N, "parallel").

    x_ref   : (L, E)    queries for this batch element (also the residual)
    ctx_ref : (S, E)    key/value source for this batch element
    wq_ref  : (E, E)    pre-transposed Q projection, 1/sqrt(dh) folded in
    wkv_ref : (E, 2E)   fused, pre-transposed K|V projection
    bq_ref  : (1, E)    scaled Q bias
    bkv_ref : (1, 2E)   fused K|V bias
    wo_ref  : (E, E)    pre-transposed output projection
    bo_ref  : (1, E)
    out_ref : (L, E)    x + attn_output
    """
    L, E = x_ref.shape
    S = ctx_ref.shape[0]
    H = num_heads
    dh = E // H

    x = x_ref[...]
    c = ctx_ref[...]

    # Lane-dense 2-D projections: one (L,E)@(E,E) for Q (scale pre-folded) and
    # one (S,E)@(E,2E) for fused K|V.  No head-blocked weights, no broadcasts.
    q = jnp.dot(x, wq_ref[...], preferred_element_type=jnp.float32) + bq_ref[...]
    kv = jnp.dot(c, wkv_ref[...], preferred_element_type=jnp.float32) + bkv_ref[...]
    k = kv[:, :E]
    v = kv[:, E:]

    # Per-head attention.  H is tiny and static -> fully unrolled; heads are
    # plain static lane slices (no in-kernel reshapes / transposes).
    head_out = []
    for h in range(H):
        lo = h * dh
        qh = q[:, lo:lo + dh]                                          # (L, dh)
        kh = k[:, lo:lo + dh]                                          # (S, dh)
        vh = v[:, lo:lo + dh]                                          # (S, dh)
        # QK^T: contract the last dim of both operands (no transpose needed).
        s = lax.dot_general(qh, kh, (((1,), (1,)), ((), ())),
                            preferred_element_type=jnp.float32)        # (L, S)
        m = jnp.max(s, axis=-1, keepdims=True)
        p = jnp.exp(s - m)
        den = jnp.sum(p, axis=-1, keepdims=True)
        # Exact normalization (post-PV) for tight parity with the reference.
        ch = jnp.dot(p, vh, preferred_element_type=jnp.float32) / den  # (L, dh)
        head_out.append(ch)

    # Merge heads back into the lane dim -> single E-deep output projection.
    ctx_merged = jnp.concatenate(head_out, axis=-1)                    # (L, E)
    attn = jnp.dot(ctx_merged, wo_ref[...],
                   preferred_element_type=jnp.float32) + bo_ref[...]   # (L, E)

    out_ref[...] = x + attn                                            # residual


def pack_params(params, embed_dim, num_heads):
    """One-time (init-time) weight packing: lane-dense 2-D weights,
    pre-transposed, K|V fused, 1/sqrt(dh) folded into the Q projection."""
    E = embed_dim
    dh = E // num_heads
    scale = 1.0 / math.sqrt(dh)
    wq_t = params["wq"].T * scale                                      # (E, E)
    bq_s = (params["bq"] * scale).reshape(1, E)                        # (1, E)
    wkv_t = jnp.concatenate([params["wk"].T, params["wv"].T], axis=1)  # (E, 2E)
    bkv = jnp.concatenate([params["bk"], params["bv"]]).reshape(1, 2 * E)
    wo_t = params["wo"].T                                              # (E, E)
    bo = params["bo"].reshape(1, E)                                    # (1, E)
    return (wq_t, wkv_t, bq_s, bkv, wo_t, bo)


def guided_attention_pallas(x_lne, ctx_sne, packed, num_heads):
    """x_lne: (L, N, E) query; ctx_sne: (S, N, E) key/value (PyTorch seq-first)."""
    L, N, E = x_lne.shape
    S = ctx_sne.shape[0]
    assert E % num_heads == 0, "embed_dim must be divisible by num_heads"

    # Layout plumbing only: batch-major so every grid step sees a dense (L, E)
    # slab — no middle-dim slicing / sublane-masked stores inside the kernel.
    x_nle = jnp.transpose(x_lne, (1, 0, 2))        # (N, L, E)
    ctx_nse = jnp.transpose(ctx_sne, (1, 0, 2))    # (N, S, E)

    wq_t, wkv_t, bq_s, bkv, wo_t, bo = packed

    const2 = lambda shp: pl.BlockSpec(shp, lambda n: (0, 0))

    out_nle = pl.pallas_call(
        functools.partial(_guided_attn_kernel, num_heads=num_heads),
        out_shape=jax.ShapeDtypeStruct((N, L, E), jnp.float32),
        grid=(N,),  # batch as a parallel grid axis (megacore / v7x 2-TC ready)
        in_specs=[
            pl.BlockSpec((None, L, E), lambda n: (n, 0, 0)),   # x (per batch)
            pl.BlockSpec((None, S, E), lambda n: (n, 0, 0)),   # context
            const2((E, E)),        # Wq^T (scale folded)
            const2((E, 2 * E)),    # fused [Wk^T | Wv^T]
            const2((1, E)),        # bq (scaled)
            const2((1, 2 * E)),    # fused [bk | bv]
            const2((E, E)),        # Wo^T
            const2((1, E)),        # bo
        ],
        out_specs=pl.BlockSpec((None, L, E), lambda n: (n, 0, 0)),
        compiler_params=pltpu.CompilerParams(
            dimension_semantics=("parallel",)),
    )(x_nle, ctx_nse, wq_t, wkv_t, bq_s, bkv, wo_t, bo)

    return jnp.transpose(out_nle, (1, 0, 2))       # back to (L, N, E)


def guided_attention_ref(x_lne, ctx_sne, params, num_heads):
    """Pure-JAX reference mirroring torch.nn.MultiheadAttention forward."""
    L, N, E = x_lne.shape
    S = ctx_sne.shape[0]
    dh = E // num_heads
    scale = 1.0 / math.sqrt(dh)

    q = jnp.einsum("lne,fe->lnf", x_lne, params["wq"]) + params["bq"]
    k = jnp.einsum("sne,fe->snf", ctx_sne, params["wk"]) + params["bk"]
    v = jnp.einsum("sne,fe->snf", ctx_sne, params["wv"]) + params["bv"]

    q = q.reshape(L, N, num_heads, dh)
    k = k.reshape(S, N, num_heads, dh)
    v = v.reshape(S, N, num_heads, dh)

    scores = jnp.einsum("lnhd,snhd->nhls", q, k) * scale
    probs = jax.nn.softmax(scores, axis=-1)
    ctxo = jnp.einsum("nhls,snhd->lnhd", probs, v).reshape(L, N, E)

    attn_out = jnp.einsum("lne,fe->lnf", ctxo, params["wo"]) + params["bo"]
    return x_lne + attn_out


def init_params(key, embed_dim):
    # Deterministic synthetic parameters (shapes follow nn.MultiheadAttention).
    ks = jax.random.split(key, 4)
    scale = 1.0 / math.sqrt(embed_dim)
    in_proj_w = jax.random.uniform(ks[0], (3 * embed_dim, embed_dim),
                                   jnp.float32, -scale, scale)
    in_proj_b = jax.random.uniform(ks[1], (3 * embed_dim,),
                                   jnp.float32, -scale, scale)
    out_proj_w = jax.random.uniform(ks[2], (embed_dim, embed_dim),
                                    jnp.float32, -scale, scale)
    out_proj_b = jnp.zeros((embed_dim,), jnp.float32)
    return {
        "wq": in_proj_w[0 * embed_dim:1 * embed_dim],
        "wk": in_proj_w[1 * embed_dim:2 * embed_dim],
        "wv": in_proj_w[2 * embed_dim:3 * embed_dim],
        "bq": in_proj_b[0 * embed_dim:1 * embed_dim],
        "bk": in_proj_b[1 * embed_dim:2 * embed_dim],
        "bv": in_proj_b[2 * embed_dim:3 * embed_dim],
        "wo": out_proj_w,
        "bo": out_proj_b,
    }


if __name__ == "__main__":
    EMBED_DIM = 32
    NUM_HEADS = 4
    L = 8     # target (query) sequence length
    S = 8     # source (context) sequence length
    N = 2     # batch

    key = jax.random.PRNGKey(0)
    kx, kc, kp = jax.random.split(key, 3)

    x = jax.random.normal(kx, (L, N, EMBED_DIM), jnp.float32)          # query, seq-first
    context = jax.random.normal(kc, (S, N, EMBED_DIM), jnp.float32)    # key/value, seq-first
    params = init_params(kp, EMBED_DIM)

    # One-time weight packing, outside the per-call path.
    packed = jax.tree.map(jax.block_until_ready,
                          pack_params(params, EMBED_DIM, NUM_HEADS))

    out = guided_attention_pallas(x, context, packed, NUM_HEADS)
    out = jax.block_until_ready(out)

    ref = guided_attention_ref(x, context, params, NUM_HEADS)
    assert out.shape == (L, N, EMBED_DIM)
    assert jnp.allclose(out, ref, atol=1e-4, rtol=1e-4), "mismatch vs reference"

    print("KERNEL_OK")
</pallas_src>

<mosaic_0001>
module attributes {stable_mosaic.version = 11 : i64} {
  func.func @_guided_attn_kernel(%arg0: i32, %arg1: memref<1x8x32xf32, #tpu.memory_space<vmem>>, %arg2: memref<1x8x32xf32, #tpu.memory_space<vmem>>, %arg3: memref<32x32xf32, #tpu.memory_space<vmem>>, %arg4: memref<32x64xf32, #tpu.memory_space<vmem>>, %arg5: memref<1x32xf32, #tpu.memory_space<vmem>>, %arg6: memref<1x64xf32, #tpu.memory_space<vmem>>, %arg7: memref<32x32xf32, #tpu.memory_space<vmem>>, %arg8: memref<1x32xf32, #tpu.memory_space<vmem>>, %arg9: memref<1x8x32xf32, #tpu.memory_space<vmem>>) attributes {dimension_semantics = [#tpu.dimension_semantics<parallel>], iteration_bounds = array<i64: 2>, scalar_prefetch = 0 : i64, scratch_operands = 0 : i64, tpu.core_type = #tpu.core_type<tc>, window_params = [{transform_indices = @transform_0, window_bounds = array<i64: 1, 8, 32>}, {transform_indices = @transform_1, window_bounds = array<i64: 1, 8, 32>}, {pipeline_mode = #tpu.pipeline_mode<synchronous>, transform_indices = @transform_2, window_bounds = array<i64: 32, 32>}, {pipeline_mode = #tpu.pipeline_mode<synchronous>, transform_indices = @transform_3, window_bounds = array<i64: 32, 64>}, {pipeline_mode = #tpu.pipeline_mode<synchronous>, transform_indices = @transform_4, window_bounds = array<i64: 1, 32>}, {pipeline_mode = #tpu.pipeline_mode<synchronous>, transform_indices = @transform_5, window_bounds = array<i64: 1, 64>}, {pipeline_mode = #tpu.pipeline_mode<synchronous>, transform_indices = @transform_6, window_bounds = array<i64: 32, 32>}, {pipeline_mode = #tpu.pipeline_mode<synchronous>, transform_indices = @transform_7, window_bounds = array<i64: 1, 32>}, {transform_indices = @transform_8, window_bounds = array<i64: 1, 8, 32>}]} {
    %c0 = arith.constant 0 : index
    %c0_0 = arith.constant 0 : index
    %c0_1 = arith.constant 0 : index
    %0 = vector.load %arg1[%c0, %c0_0, %c0_1] : memref<1x8x32xf32, #tpu.memory_space<vmem>>, vector<1x8x32xf32>
    %1 = vector.shape_cast %0 : vector<1x8x32xf32> to vector<8x32xf32>
    %c0_2 = arith.constant 0 : index
    %c0_3 = arith.constant 0 : index
    %c0_4 = arith.constant 0 : index
    %2 = vector.load %arg2[%c0_2, %c0_3, %c0_4] : memref<1x8x32xf32, #tpu.memory_space<vmem>>, vector<1x8x32xf32>
    %3 = vector.shape_cast %2 : vector<1x8x32xf32> to vector<8x32xf32>
    %c0_5 = arith.constant 0 : index
    %c0_6 = arith.constant 0 : index
    %4 = vector.load %arg3[%c0_5, %c0_6] : memref<32x32xf32, #tpu.memory_space<vmem>>, vector<32x32xf32>
    %cst = arith.constant dense<0.000000e+00> : vector<8x32xf32>
    %5 = tpu.matmul %1, %4, %cst {dimension_numbers = #tpu.dot_dimension_numbers<[1], [0], [0], [1], [0, 0, 1, 1], [], []>} : vector<8x32xf32>, vector<32x32xf32>, vector<8x32xf32> -> vector<8x32xf32>
    %c0_7 = arith.constant 0 : index
    %c0_8 = arith.constant 0 : index
    %6 = vector.load %arg5[%c0_7, %c0_8] : memref<1x32xf32, #tpu.memory_space<vmem>>, vector<1x32xf32>
    %7 = vector.broadcast %6 : vector<1x32xf32> to vector<8x32xf32>
    %8 = arith.addf %5, %7 : vector<8x32xf32>
    %c0_9 = arith.constant 0 : index
    %c0_10 = arith.constant 0 : index
    %9 = vector.load %arg4[%c0_9, %c0_10] : memref<32x64xf32, #tpu.memory_space<vmem>>, vector<32x64xf32>
    %cst_11 = arith.constant dense<0.000000e+00> : vector<8x64xf32>
    %10 = tpu.matmul %3, %9, %cst_11 {dimension_numbers = #tpu.dot_dimension_numbers<[1], [0], [0], [1], [0, 0, 1, 1], [], []>} : vector<8x32xf32>, vector<32x64xf32>, vector<8x64xf32> -> vector<8x64xf32>
    %c0_12 = arith.constant 0 : index
    %c0_13 = arith.constant 0 : index
    %11 = vector.load %arg6[%c0_12, %c0_13] : memref<1x64xf32, #tpu.memory_space<vmem>>, vector<1x64xf32>
    %12 = vector.broadcast %11 : vector<1x64xf32> to vector<8x64xf32>
    %13 = arith.addf %10, %12 : vector<8x64xf32>
    %14 = vector.extract_strided_slice %13 {offsets = [0, 0], sizes = [8, 32], strides = [1, 1]} : vector<8x64xf32> to vector<8x32xf32>
    %15 = vector.extract_strided_slice %13 {offsets = [0, 32], sizes = [8, 32], strides = [1, 1]} : vector<8x64xf32> to vector<8x32xf32>
    %16 = vector.extract_strided_slice %8 {offsets = [0, 0], sizes = [8, 8], strides = [1, 1]} : vector<8x32xf32> to vector<8x8xf32>
    %17 = vector.extract_strided_slice %14 {offsets = [0, 0], sizes = [8, 8], strides = [1, 1]} : vector<8x32xf32> to vector<8x8xf32>
    %18 = vector.extract_strided_slice %15 {offsets = [0, 0], sizes = [8, 8], strides = [1, 1]} : vector<8x32xf32> to vector<8x8xf32>
    %cst_14 = arith.constant dense<0.000000e+00> : vector<8x8xf32>
    %19 = tpu.matmul %16, %17, %cst_14 {dimension_numbers = #tpu.dot_dimension_numbers<[1], [1], [0], [0], [0, 0, 1, 0], [], []>} : vector<8x8xf32>, vector<8x8xf32>, vector<8x8xf32> -> vector<8x8xf32>
    %cst_15 = arith.constant dense<0xFF800000> : vector<8xf32>
    %20 = vector.multi_reduction <maximumf>, %19, %cst_15 [1] : vector<8x8xf32> to vector<8xf32>
    %21 = vector.shape_cast %20 : vector<8xf32> to vector<8x1xf32>
    %22 = vector.broadcast %21 : vector<8x1xf32> to vector<8x8xf32>
    %23 = arith.subf %19, %22 : vector<8x8xf32>
    %24 = math.exp %23 : vector<8x8xf32>
    %cst_16 = arith.constant dense<0.000000e+00> : vector<8xf32>
    %25 = vector.multi_reduction <add>, %24, %cst_16 [1] : vector<8x8xf32> to vector<8xf32>
    %26 = vector.shape_cast %25 : vector<8xf32> to vector<8x1xf32>
    %cst_17 = arith.constant dense<0.000000e+00> : vector<8x8xf32>
    %27 = tpu.matmul %24, %18, %cst_17 {dimension_numbers = #tpu.dot_dimension_numbers<[1], [0], [0], [1], [0, 0, 1, 1], [], []>} : vector<8x8xf32>, vector<8x8xf32>, vector<8x8xf32> -> vector<8x8xf32>
    %28 = vector.broadcast %26 : vector<8x1xf32> to vector<8x8xf32>
    %29 = arith.divf %27, %28 : vector<8x8xf32>
    %30 = vector.extract_strided_slice %8 {offsets = [0, 8], sizes = [8, 8], strides = [1, 1]} : vector<8x32xf32> to vector<8x8xf32>
    %31 = vector.extract_strided_slice %14 {offsets = [0, 8], sizes = [8, 8], strides = [1, 1]} : vector<8x32xf32> to vector<8x8xf32>
    %32 = vector.extract_strided_slice %15 {offsets = [0, 8], sizes = [8, 8], strides = [1, 1]} : vector<8x32xf32> to vector<8x8xf32>
    %cst_18 = arith.constant dense<0.000000e+00> : vector<8x8xf32>
    %33 = tpu.matmul %30, %31, %cst_18 {dimension_numbers = #tpu.dot_dimension_numbers<[1], [1], [0], [0], [0, 0, 1, 0], [], []>} : vector<8x8xf32>, vector<8x8xf32>, vector<8x8xf32> -> vector<8x8xf32>
    %cst_19 = arith.constant dense<0xFF800000> : vector<8xf32>
    %34 = vector.multi_reduction <maximumf>, %33, %cst_19 [1] : vector<8x8xf32> to vector<8xf32>
    %35 = vector.shape_cast %34 : vector<8xf32> to vector<8x1xf32>
    %36 = vector.broadcast %35 : vector<8x1xf32> to vector<8x8xf32>
    %37 = arith.subf %33, %36 : vector<8x8xf32>
    %38 = math.exp %37 : vector<8x8xf32>
    %cst_20 = arith.constant dense<0.000000e+00> : vector<8xf32>
    %39 = vector.multi_reduction <add>, %38, %cst_20 [1] : vector<8x8xf32> to vector<8xf32>
    %40 = vector.shape_cast %39 : vector<8xf32> to vector<8x1xf32>
    %cst_21 = arith.constant dense<0.000000e+00> : vector<8x8xf32>
    %41 = tpu.matmul %38, %32, %cst_21 {dimension_numbers = #tpu.dot_dimension_numbers<[1], [0], [0], [1], [0, 0, 1, 1], [], []>} : vector<8x8xf32>, vector<8x8xf32>, vector<8x8xf32> -> vector<8x8xf32>
    %42 = vector.broadcast %40 : vector<8x1xf32> to vector<8x8xf32>
    %43 = arith.divf %41, %42 : vector<8x8xf32>
    %44 = vector.extract_strided_slice %8 {offsets = [0, 16], sizes = [8, 8], strides = [1, 1]} : vector<8x32xf32> to vector<8x8xf32>
    %45 = vector.extract_strided_slice %14 {offsets = [0, 16], sizes = [8, 8], strides = [1, 1]} : vector<8x32xf32> to vector<8x8xf32>
    %46 = vector.extract_strided_slice %15 {offsets = [0, 16], sizes = [8, 8], strides = [1, 1]} : vector<8x32xf32> to vector<8x8xf32>
    %cst_22 = arith.constant dense<0.000000e+00> : vector<8x8xf32>
    %47 = tpu.matmul %44, %45, %cst_22 {dimension_numbers = #tpu.dot_dimension_numbers<[1], [1], [0], [0], [0, 0, 1, 0], [], []>} : vector<8x8xf32>, vector<8x8xf32>, vector<8x8xf32> -> vector<8x8xf32>
    %cst_23 = arith.constant dense<0xFF800000> : vector<8xf32>
    %48 = vector.multi_reduction <maximumf>, %47, %cst_23 [1] : vector<8x8xf32> to vector<8xf32>
    %49 = vector.shape_cast %48 : vector<8xf32> to vector<8x1xf32>
    %50 = vector.broadcast %49 : vector<8x1xf32> to vector<8x8xf32>
    %51 = arith.subf %47, %50 : vector<8x8xf32>
    %52 = math.exp %51 : vector<8x8xf32>
    %cst_24 = arith.constant dense<0.000000e+00> : vector<8xf32>
    %53 = vector.multi_reduction <add>, %52, %cst_24 [1] : vector<8x8xf32> to vector<8xf32>
    %54 = vector.shape_cast %53 : vector<8xf32> to vector<8x1xf32>
    %cst_25 = arith.constant dense<0.000000e+00> : vector<8x8xf32>
    %55 = tpu.matmul %52, %46, %cst_25 {dimension_numbers = #tpu.dot_dimension_numbers<[1], [0], [0], [1], [0, 0, 1, 1], [], []>} : vector<8x8xf32>, vector<8x8xf32>, vector<8x8xf32> -> vector<8x8xf32>
    %56 = vector.broadcast %54 : vector<8x1xf32> to vector<8x8xf32>
    %57 = arith.divf %55, %56 : vector<8x8xf32>
    %58 = vector.extract_strided_slice %8 {offsets = [0, 24], sizes = [8, 8], strides = [1, 1]} : vector<8x32xf32> to vector<8x8xf32>
    %59 = vector.extract_strided_slice %14 {offsets = [0, 24], sizes = [8, 8], strides = [1, 1]} : vector<8x32xf32> to vector<8x8xf32>
    %60 = vector.extract_strided_slice %15 {offsets = [0, 24], sizes = [8, 8], strides = [1, 1]} : vector<8x32xf32> to vector<8x8xf32>
    %cst_26 = arith.constant dense<0.000000e+00> : vector<8x8xf32>
    %61 = tpu.matmul %58, %59, %cst_26 {dimension_numbers = #tpu.dot_dimension_numbers<[1], [1], [0], [0], [0, 0, 1, 0], [], []>} : vector<8x8xf32>, vector<8x8xf32>, vector<8x8xf32> -> vector<8x8xf32>
    %cst_27 = arith.constant dense<0xFF800000> : vector<8xf32>
    %62 = vector.multi_reduction <maximumf>, %61, %cst_27 [1] : vector<8x8xf32> to vector<8xf32>
    %63 = vector.shape_cast %62 : vector<8xf32> to vector<8x1xf32>
    %64 = vector.broadcast %63 : vector<8x1xf32> to vector<8x8xf32>
    %65 = arith.subf %61, %64 : vector<8x8xf32>
    %66 = math.exp %65 : vector<8x8xf32>
    %cst_28 = arith.constant dense<0.000000e+00> : vector<8xf32>
    %67 = vector.multi_reduction <add>, %66, %cst_28 [1] : vector<8x8xf32> to vector<8xf32>
    %68 = vector.shape_cast %67 : vector<8xf32> to vector<8x1xf32>
    %cst_29 = arith.constant dense<0.000000e+00> : vector<8x8xf32>
    %69 = tpu.matmul %66, %60, %cst_29 {dimension_numbers = #tpu.dot_dimension_numbers<[1], [0], [0], [1], [0, 0, 1, 1], [], []>} : vector<8x8xf32>, vector<8x8xf32>, vector<8x8xf32> -> vector<8x8xf32>
    %70 = vector.broadcast %68 : vector<8x1xf32> to vector<8x8xf32>
    %71 = arith.divf %69, %70 : vector<8x8xf32>
    %72 = tpu.concatenate %29, %43, %57, %71 in 1 : vector<8x8xf32>, vector<8x8xf32>, vector<8x8xf32>, vector<8x8xf32> -> vector<8x32xf32>
    %c0_30 = arith.constant 0 : index
    %c0_31 = arith.constant 0 : index
    %73 = vector.load %arg7[%c0_30, %c0_31] : memref<32x32xf32, #tpu.memory_space<vmem>>, vector<32x32xf32>
    %cst_32 = arith.constant dense<0.000000e+00> : vector<8x32xf32>
    %74 = tpu.matmul %72, %73, %cst_32 {dimension_numbers = #tpu.dot_dimension_numbers<[1], [0], [0], [1], [0, 0, 1, 1], [], []>} : vector<8x32xf32>, vector<32x32xf32>, vector<8x32xf32> -> vector<8x32xf32>
    %c0_33 = arith.constant 0 : index
    %c0_34 = arith.constant 0 : index
    %75 = vector.load %arg8[%c0_33, %c0_34] : memref<1x32xf32, #tpu.memory_space<vmem>>, vector<1x32xf32>
    %76 = vector.broadcast %75 : vector<1x32xf32> to vector<8x32xf32>
    %77 = arith.addf %74, %76 : vector<8x32xf32>
    %78 = arith.addf %1, %77 : vector<8x32xf32>
    %c0_35 = arith.constant 0 : index
    %c0_36 = arith.constant 0 : index
    %c0_37 = arith.constant 0 : index
    %79 = vector.load %arg9[%c0_35, %c0_36, %c0_37] : memref<1x8x32xf32, #tpu.memory_space<vmem>>, vector<1x8x32xf32>
    %80 = vector.shape_cast %79 : vector<1x8x32xf32> to vector<8x32xf32>
    %81 = vector.shape_cast %78 : vector<8x32xf32> to vector<1x8x32xf32>
    tpu.vector_store %arg9[%c0_35, %c0_36, %c0_37], %81 {strides = array<i32>} : memref<1x8x32xf32, #tpu.memory_space<vmem>>, vector<1x8x32xf32>,
    return
  }
  func.func @transform_0(%arg0: i32) -> (i32, i32, i32) {
    %c0_i32 = arith.constant 0 : i32
    %c0_i32_0 = arith.constant 0 : i32
    %c0_i32_1 = arith.constant 0 : i32
    return %arg0, %c0_i32, %c0_i32_0 : i32, i32, i32
  }
  func.func @transform_1(%arg0: i32) -> (i32, i32, i32) {
    %c0_i32 = arith.constant 0 : i32
    %c0_i32_0 = arith.constant 0 : i32
    %c0_i32_1 = arith.constant 0 : i32
    return %arg0, %c0_i32, %c0_i32_0 : i32, i32, i32
  }
  func.func @transform_2(%arg0: i32) -> (i32, i32) {
    %c0_i32 = arith.constant 0 : i32
    %c0_i32_0 = arith.constant 0 : i32
    %c0_i32_1 = arith.constant 0 : i32
    return %c0_i32, %c0_i32_0 : i32, i32
  }
  func.func @transform_3(%arg0: i32) -> (i32, i32) {
    %c0_i32 = arith.constant 0 : i32
    %c0_i32_0 = arith.constant 0 : i32
    %c0_i32_1 = arith.constant 0 : i32
    return %c0_i32, %c0_i32_0 : i32, i32
  }
  func.func @transform_4(%arg0: i32) -> (i32, i32) {
    %c0_i32 = arith.constant 0 : i32
    %c0_i32_0 = arith.constant 0 : i32
    %c0_i32_1 = arith.constant 0 : i32
    return %c0_i32, %c0_i32_0 : i32, i32
  }
  func.func @transform_5(%arg0: i32) -> (i32, i32) {
    %c0_i32 = arith.constant 0 : i32
    %c0_i32_0 = arith.constant 0 : i32
    %c0_i32_1 = arith.constant 0 : i32
    return %c0_i32, %c0_i32_0 : i32, i32
  }
  func.func @transform_6(%arg0: i32) -> (i32, i32) {
    %c0_i32 = arith.constant 0 : i32
    %c0_i32_0 = arith.constant 0 : i32
    %c0_i32_1 = arith.constant 0 : i32
    return %c0_i32, %c0_i32_0 : i32, i32
  }
  func.func @transform_7(%arg0: i32) -> (i32, i32) {
    %c0_i32 = arith.constant 0 : i32
    %c0_i32_0 = arith.constant 0 : i32
    %c0_i32_1 = arith.constant 0 : i32
    return %c0_i32, %c0_i32_0 : i32, i32
  }
  func.func @transform_8(%arg0: i32) -> (i32, i32, i32) {
    %c0_i32 = arith.constant 0 : i32
    %c0_i32_0 = arith.constant 0 : i32
    %c0_i32_1 = arith.constant 0 : i32
    return %arg0, %c0_i32, %c0_i32_0 : i32, i32, i32
  }
}

</mosaic_0001>

<llo_original>
// kernel: tpu_custom_call.1
$region0: #{tpu_custom_call.1}
  #allocation0 [shape = 'u32[]', space=smem, size = 0x4, offset = 0x4, fixed_abs, tag = 'smem constant byte address 0x4 - core index']
  #allocation1 [shape = 'u32[72,128]{1,0:T(1,128)}', space=vmem, size = 0x9000, scoped, tag = 'internal scratch']
  %s0 = inlined_call_operand.hbm [shape: f32[2,8,32], index: 0, kind: input, shape index: {}]
  %s1 = inlined_call_operand.hbm [shape: f32[2,8,32], index: 1, kind: input, shape index: {}]
  %s2 = inlined_call_operand.hbm [shape: f32[32,32], index: 2, kind: input, shape index: {}]
  %s3 = inlined_call_operand.hbm [shape: f32[32,64], index: 3, kind: input, shape index: {}]
  %s4 = inlined_call_operand.vmem [shape: f32[1,32], index: 4, kind: input, shape index: {}]
  %s5 = inlined_call_operand.vmem [shape: f32[1,64], index: 5, kind: input, shape index: {}]
  %s6 = inlined_call_operand.hbm [shape: f32[32,32], index: 6, kind: input, shape index: {}]
  %s7 = inlined_call_operand.vmem [shape: f32[1,32], index: 7, kind: input, shape index: {}]
  %s8 = inlined_call_operand.hbm [shape: f32[2,8,32], index: 8, kind: output, shape index: {}]
  %s9 = sld [smem:[#allocation0]]
  $region85: #{tpu_custom_call.1} parent=0
    _
  %s11 = ssub.s32 1, %s9
  %s12 = scalar_select 0, %s11, %s9
  $region1: #{tpu_custom_call.1} parent=0
    #allocation2 [shape = 'u8[8192]{0}', space=vmem, size = 0x2000, scoped, tag = 'input window, operand 0']
    #allocation3 [shape = 's32[2]{0}', space=sflag, size = 0x8, scoped, tag = 'scoped memory for tpu_custom_call.1']
    #allocation4 [shape = 's32[2]{0}', space=sflag, size = 0x8, scoped, tag = 'scoped memory for tpu_custom_call.1']
    #allocation5 [shape = 'u8[8192]{0}', space=vmem, size = 0x2000, scoped, tag = 'input window, operand 1']
    #allocation6 [shape = 's32[2]{0}', space=sflag, size = 0x8, scoped, tag = 'scoped memory for tpu_custom_call.1']
    #allocation7 [shape = 'u8[16384]{0}', space=vmem, size = 0x4000, scoped, tag = 'input window, operand 2, single buffered']
    #allocation8 [shape = 'u8[16384]{0}', space=vmem, size = 0x4000, scoped, tag = 'input window, operand 3, single buffered']
    #allocation9 [shape = 's32[1]{0}', space=sflag, size = 0x4, scoped, tag = 'scoped memory for tpu_custom_call.1']
    #allocation10 [shape = 'u8[16384]{0}', space=vmem, size = 0x4000, scoped, tag = 'input window, operand 6, single buffered']
    #allocation11 [shape = 'u8[8192]{0}', space=vmem, size = 0x2000, scoped, tag = 'output window, operand 0']
    %13 = vsyncpa [#allocation3], 0
    %s14 = scalar_lea.sflag [#allocation3], 1
    %15 = vsyncpa %s14, 0
    %16 = vsyncpa [#allocation6], 0
    %s17 = scalar_lea.sflag [#allocation6], 1
    %18 = vsyncpa %s17, 0
    %19 = vsyncpa [#allocation9], 0
    %20 = vsyncpa [#allocation4], 0
    %s21 = scalar_lea.sflag [#allocation4], 1
    %22 = vsyncpa %s21, 0
    loop: start=0, step=1, limit=4
    $region2: #{tpu_custom_call.1} parent=1 // loop_pre_header
      _
    $region3: #{tpu_custom_call.1} parent=1 // loop_header
      %s24 = sphi 0, %s28
      %p25 = scmp.ge.s32.totalorder %s24, 4
      %s34 = sphi 0, %s36
      %s37 = sphi 0, %s34
      %s38 = sphi 0, %s37
      %s54 = sphi 0, %s38
      %s60 = sphi 0, %s62
      %s63 = sphi 0, %s60
      %s64 = sphi 0, %s63
      %s80 = sphi 0, %s64
      %s84 = sphi 0, %s84
      %s86 = sphi 0, %s84
      %s87 = sphi 0, %s86
      %s101 = sphi 0, %s87
      %s105 = sphi 0, %s105
      %s107 = sphi 0, %s105
      %s108 = sphi 0, %s107
      %s122 = sphi 0, %s108
      %s126 = sphi 0, %s126
      %s128 = sphi 0, %s126
      %s129 = sphi 0, %s128
      %s143 = sphi 0, %s129
      %s147 = sphi 0, %s147
      %s149 = sphi 0, %s147
      %s150 = sphi 0, %s149
      %s164 = sphi 0, %s150
      %s168 = sphi 0, %s168
      %s170 = sphi 0, %s168
      %s171 = sphi 0, %s170
      %s185 = sphi 0, %s171
      %s189 = sphi 0, %s189
      %s191 = sphi 0, %s189
      %s192 = sphi 0, %s191
      %s206 = sphi 0, %s192
      %s212 = sphi 0, %s214
      %s215 = sphi 0, %s212
      %s216 = sphi 0, %s215
      %s232 = sphi 0, %s216
    $region4: #{tpu_custom_call.1} parent=1 // loop_header_branch
      %27 = sbr.rel (%p25) target = $region8
    $region5: #{tpu_custom_call.1} parent=1 // loop_body
      %s29 = ssub.s32 %s24, 1
      %s30 = ssub.s32 %s24, 2
      %s31 = sadd.s32 %s24, 1
      %s32 = ssub.s32 %s24, %s31
      %p33 = scmp.eq.s32.totalorder %s32, 0
      %s35 = sadd.s32 %s34, 1
      %s36 = scalar_select %p33, %s34, %s35
      %p39 = pneg %p33
      %p40 = scmp.eq.s32.totalorder %s24, 1
      %p41 = por %p39, %p40
      %p42 = scmp.ne.s32.totalorder %s34, %s37
      %p43 = scmp.eq.s32.totalorder %s24, 0
      %p44 = por %p42, %p43
      %p45 = scmp.ne.s32.totalorder %s34, %s37
      %p46 = scmp.eq.s32.totalorder %s29, 1
      %p47 = por %p45, %p46
      %p48 = scmp.ne.s32.totalorder %s37, %s38
      %p49 = scmp.eq.s32.totalorder %s29, 0
      %p50 = por %p48, %p49
      %p51 = scmp.ne.s32.totalorder %s37, %s38
      %p52 = scmp.eq.s32.totalorder %s30, 1
      %p53 = por %p51, %p52
      %p55 = scmp.ne.s32.totalorder %s38, %s54
      %p56 = scmp.eq.s32.totalorder %s30, 0
      %p57 = por %p55, %p56
      %s58 = ssub.s32 %s24, %s31
      %p59 = scmp.eq.s32.totalorder %s58, 0
      %s61 = sadd.s32 %s60, 1
      %s62 = scalar_select %p59, %s60, %s61
      %p65 = pneg %p59
      %p66 = scmp.eq.s32.totalorder %s24, 1
      %p67 = por %p65, %p66
      %p68 = scmp.ne.s32.totalorder %s60, %s63
      %p69 = scmp.eq.s32.totalorder %s24, 0
      %p70 = por %p68, %p69
      %p71 = scmp.ne.s32.totalorder %s60, %s63
      %p72 = scmp.eq.s32.totalorder %s29, 1
      %p73 = por %p71, %p72
      %p74 = scmp.ne.s32.totalorder %s63, %s64
      %p75 = scmp.eq.s32.totalorder %s29, 0
      %p76 = por %p74, %p75
      %p77 = scmp.ne.s32.totalorder %s63, %s64
      %p78 = scmp.eq.s32.totalorder %s30, 1
      %p79 = por %p77, %p78
      %p81 = scmp.ne.s32.totalorder %s64, %s80
      %p82 = scmp.eq.s32.totalorder %s30, 0
      %p83 = por %p81, %p82
      %s85 = sadd.s32 %s84, 1
      %p88 = scmp.eq.s32.totalorder %s24, 1
      %p89 = scmp.ne.s32.totalorder %s84, %s86
      %p90 = scmp.eq.s32.totalorder %s24, 0
      %p91 = por %p89, %p90
      %p92 = scmp.ne.s32.totalorder %s84, %s86
      %p93 = scmp.eq.s32.totalorder %s29, 1
      %p94 = por %p92, %p93
      %p95 = scmp.ne.s32.totalorder %s86, %s87
      %p96 = scmp.eq.s32.totalorder %s29, 0
      %p97 = por %p95, %p96
      %p98 = scmp.ne.s32.totalorder %s86, %s87
      %p99 = scmp.eq.s32.totalorder %s30, 1
      %p100 = por %p98, %p99
      %p102 = scmp.ne.s32.totalorder %s87, %s101
      %p103 = scmp.eq.s32.totalorder %s30, 0
      %p104 = por %p102, %p103
      %s106 = sadd.s32 %s105, 1
      %p109 = scmp.eq.s32.totalorder %s24, 1
      %p110 = scmp.ne.s32.totalorder %s105, %s107
      %p111 = scmp.eq.s32.totalorder %s24, 0
      %p112 = por %p110, %p111
      %p113 = scmp.ne.s32.totalorder %s105, %s107
      %p114 = scmp.eq.s32.totalorder %s29, 1
      %p115 = por %p113, %p114
      %p116 = scmp.ne.s32.totalorder %s107, %s108
      %p117 = scmp.eq.s32.totalorder %s29, 0
      %p118 = por %p116, %p117
      %p119 = scmp.ne.s32.totalorder %s107, %s108
      %p120 = scmp.eq.s32.totalorder %s30, 1
      %p121 = por %p119, %p120
      %p123 = scmp.ne.s32.totalorder %s108, %s122
      %p124 = scmp.eq.s32.totalorder %s30, 0
      %p125 = por %p123, %p124
      %s127 = sadd.s32 %s126, 1
      %p130 = scmp.eq.s32.totalorder %s24, 1
      %p131 = scmp.ne.s32.totalorder %s126, %s128
      %p132 = scmp.eq.s32.totalorder %s24, 0
      %p133 = por %p131, %p132
      %p134 = scmp.ne.s32.totalorder %s126, %s128
      %p135 = scmp.eq.s32.totalorder %s29, 1
      %p136 = por %p134, %p135
      %p137 = scmp.ne.s32.totalorder %s128, %s129
      %p138 = scmp.eq.s32.totalorder %s29, 0
      %p139 = por %p137, %p138
      %p140 = scmp.ne.s32.totalorder %s128, %s129
      %p141 = scmp.eq.s32.totalorder %s30, 1
      %p142 = por %p140, %p141
      %p144 = scmp.ne.s32.totalorder %s129, %s143
      %p145 = scmp.eq.s32.totalorder %s30, 0
      %p146 = por %p144, %p145
      %s148 = sadd.s32 %s147, 1
      %p151 = scmp.eq.s32.totalorder %s24, 1
      %p152 = scmp.ne.s32.totalorder %s147, %s149
      %p153 = scmp.eq.s32.totalorder %s24, 0
      %p154 = por %p152, %p153
      %p155 = scmp.ne.s32.totalorder %s147, %s149
      %p156 = scmp.eq.s32.totalorder %s29, 1
      %p157 = por %p155, %p156
      %p158 = scmp.ne.s32.totalorder %s149, %s150
      %p159 = scmp.eq.s32.totalorder %s29, 0
      %p160 = por %p158, %p159
      %p161 = scmp.ne.s32.totalorder %s149, %s150
      %p162 = scmp.eq.s32.totalorder %s30, 1
      %p163 = por %p161, %p162
      %p165 = scmp.ne.s32.totalorder %s150, %s164
      %p166 = scmp.eq.s32.totalorder %s30, 0
      %p167 = por %p165, %p166
      %s169 = sadd.s32 %s168, 1
      %p172 = scmp.eq.s32.totalorder %s24, 1
      %p173 = scmp.ne.s32.totalorder %s168, %s170
      %p174 = scmp.eq.s32.totalorder %s24, 0
      %p175 = por %p173, %p174
      %p176 = scmp.ne.s32.totalorder %s168, %s170
      %p177 = scmp.eq.s32.totalorder %s29, 1
      %p178 = por %p176, %p177
      %p179 = scmp.ne.s32.totalorder %s170, %s171
      %p180 = scmp.eq.s32.totalorder %s29, 0
      %p181 = por %p179, %p180
      %p182 = scmp.ne.s32.totalorder %s170, %s171
      %p183 = scmp.eq.s32.totalorder %s30, 1
      %p184 = por %p182, %p183
      %p186 = scmp.ne.s32.totalorder %s171, %s185
      %p187 = scmp.eq.s32.totalorder %s30, 0
      %p188 = por %p186, %p187
      %s190 = sadd.s32 %s189, 1
      %p193 = scmp.eq.s32.totalorder %s24, 1
      %p194 = scmp.ne.s32.totalorder %s189, %s191
      %p195 = scmp.eq.s32.totalorder %s24, 0
      %p196 = por %p194, %p195
      %p197 = scmp.ne.s32.totalorder %s189, %s191
      %p198 = scmp.eq.s32.totalorder %s29, 1
      %p199 = por %p197, %p198
      %p200 = scmp.ne.s32.totalorder %s191, %s192
      %p201 = scmp.eq.s32.totalorder %s29, 0
      %p202 = por %p200, %p201
      %p203 = scmp.ne.s32.totalorder %s191, %s192
      %p204 = scmp.eq.s32.totalorder %s30, 1
      %p205 = por %p203, %p204
      %p207 = scmp.ne.s32.totalorder %s192, %s206
      %p208 = scmp.eq.s32.totalorder %s30, 0
      %p209 = por %p207, %p208
      %s210 = ssub.s32 %s24, %s31
      %p211 = scmp.eq.s32.totalorder %s210, 0
      %s213 = sadd.s32 %s212, 1
      %s214 = scalar_select %p211, %s212, %s213
      %p217 = pneg %p211
      %p218 = scmp.eq.s32.totalorder %s24, 1
      %p219 = por %p217, %p218
      %p220 = scmp.ne.s32.totalorder %s212, %s215
      %p221 = scmp.eq.s32.totalorder %s24, 0
      %p222 = por %p220, %p221
      %p223 = scmp.ne.s32.totalorder %s212, %s215
      %p224 = scmp.eq.s32.totalorder %s29, 1
      %p225 = por %p223, %p224
      %p226 = scmp.ne.s32.totalorder %s215, %s216
      %p227 = scmp.eq.s32.totalorder %s29, 0
      %p228 = por %p226, %p227
      %p229 = scmp.ne.s32.totalorder %s215, %s216
      %p230 = scmp.eq.s32.totalorder %s30, 1
      %p231 = por %p229, %p230
      %p233 = scmp.ne.s32.totalorder %s216, %s232
      %p234 = scmp.eq.s32.totalorder %s30, 0
      %p235 = por %p233, %p234
      %p236 = scmp.le.s32.totalorder 1, %s24
      %p237 = scmp.lt.s32.totalorder %s24, 3
      %p238 = pnand %p236, %p237
      %p239 = pneg %p238
      // Predicated region
      $region9: #{tpu_custom_call.1} parent=5 // pred_check
        _
      $region10: #{tpu_custom_call.1} parent=5 // pred_check_branch
        %241 = sbr.rel (%p238) target = $region12
      $region11: #{tpu_custom_call.1} parent=5 // pred_region
        %s242 = ssub.s32 %s24, 1
        // Predicated region
        $region13: #{tpu_custom_call.1} parent=11 // pred_check
          %p243 = pneg %p97
        $region14: #{tpu_custom_call.1} parent=11 // pred_check_branch
          %245 = sbr.rel (%p243) target = $region16
        $region15: #{tpu_custom_call.1} parent=11 // pred_region
          %247 = vsyncadd [#allocation6], 0
          %s248 = sshll.u32 %s2, 4
          %s249 = int_to_ptr.hbm [resolvable:$true] %s248
          %s250 = sshll.u32 [#allocation7], 4
          %s251 = int_to_ptr.vmem [resolvable:$true] %s250
          %256 = dma.hbm_to_vmem [thread:$0]  %s249, 512, %s251, [#allocation6], 128, 128, 8
        $region16: #{tpu_custom_call.1} parent=11 // pred_fallthru
          _
        // Predicated region
        $region17: #{tpu_custom_call.1} parent=11 // pred_check
          %p257 = pneg %p118
        $region18: #{tpu_custom_call.1} parent=11 // pred_check_branch
          %259 = sbr.rel (%p257) target = $region20
        $region19: #{tpu_custom_call.1} parent=11 // pred_region
          %261 = vsyncadd [#allocation9], 0
          %s262 = sshll.u32 %s3, 4
          %s263 = int_to_ptr.hbm [resolvable:$true] %s262
          %s264 = sshll.u32 [#allocation8], 4
          %s265 = int_to_ptr.vmem [resolvable:$true] %s264
          %270 = dma.hbm_to_vmem [thread:$0]  %s263, 512, %s265, [#allocation9], 128, 128, 8
        $region20: #{tpu_custom_call.1} parent=11 // pred_fallthru
          _
        // Predicated region
        $region21: #{tpu_custom_call.1} parent=11 // pred_check
          %p271 = pneg %p139
        $region22: #{tpu_custom_call.1} parent=11 // pred_check_branch
          %273 = sbr.rel (%p271) target = $region24
        $region23: #{tpu_custom_call.1} parent=11 // pred_region
          _
        $region24: #{tpu_custom_call.1} parent=11 // pred_fallthru
          _
        // Predicated region
        $region25: #{tpu_custom_call.1} parent=11 // pred_check
          %p274 = pneg %p160
        $region26: #{tpu_custom_call.1} parent=11 // pred_check_branch
          %276 = sbr.rel (%p274) target = $region28
        $region27: #{tpu_custom_call.1} parent=11 // pred_region
          _
        $region28: #{tpu_custom_call.1} parent=11 // pred_fallthru
          _
        // Predicated region
        $region29: #{tpu_custom_call.1} parent=11 // pred_check
          %p277 = pneg %p181
        $region30: #{tpu_custom_call.1} parent=11 // pred_check_branch
          %279 = sbr.rel (%p277) target = $region32
        $region31: #{tpu_custom_call.1} parent=11 // pred_region
          %281 = vsyncadd [#allocation9], 0
          %s282 = sshll.u32 %s6, 4
          %s283 = int_to_ptr.hbm [resolvable:$true] %s282
          %s284 = sshll.u32 [#allocation10], 4
          %s285 = int_to_ptr.vmem [resolvable:$true] %s284
          %290 = dma.hbm_to_vmem [thread:$0]  %s283, 512, %s285, [#allocation9], 128, 128, 8
        $region32: #{tpu_custom_call.1} parent=11 // pred_fallthru
          _
        // Predicated region
        $region33: #{tpu_custom_call.1} parent=11 // pred_check
          %p291 = pneg %p202
        $region34: #{tpu_custom_call.1} parent=11 // pred_check_branch
          %293 = sbr.rel (%p291) target = $region36
        $region35: #{tpu_custom_call.1} parent=11 // pred_region
          _
        $region36: #{tpu_custom_call.1} parent=11 // pred_fallthru
          _
      $region12: #{tpu_custom_call.1} parent=5 // pred_fallthru
        _
      %p294 = scmp.lt.s32.totalorder %s24, 2
      // Predicated region
      $region37: #{tpu_custom_call.1} parent=5 // pred_check
        %p295 = pneg %p294
      $region38: #{tpu_custom_call.1} parent=5 // pred_check_branch
        %297 = sbr.rel (%p295) target = $region40
      $region39: #{tpu_custom_call.1} parent=5 // pred_region
        // Predicated region
        $region41: #{tpu_custom_call.1} parent=39 // pred_check
          %p298 = pneg %p44
        $region42: #{tpu_custom_call.1} parent=39 // pred_check_branch
          %300 = sbr.rel (%p298) target = $region44
        $region43: #{tpu_custom_call.1} parent=39 // pred_region
          %s301 = sand.u32 %s34, 1
          %s302 = scalar_lea.sflag [#allocation3], %s301
          %s303 = sand.u32 %s34, 1
          %s304 = smul.addr %s303, 8
          %s305 = scalar_lea.vmem [#allocation2], %s304
          %307 = vsyncadd %s302, 0
          %s308 = smul.addr %s24, 8
          %s309 = scalar_lea.hbm %s0, %s308
          %s311 = sshll.u32 %s309, 4
          %s312 = int_to_ptr.hbm [resolvable:$true] %s311
          %s313 = sshll.u32 %s305, 4
          %s314 = int_to_ptr.vmem [resolvable:$true] %s313
          %316 = dma.hbm_to_vmem [thread:$0]  %s312, 128, %s314, %s302
        $region44: #{tpu_custom_call.1} parent=39 // pred_fallthru
          _
        // Predicated region
        $region45: #{tpu_custom_call.1} parent=39 // pred_check
          %p317 = pneg %p70
        $region46: #{tpu_custom_call.1} parent=39 // pred_check_branch
          %319 = sbr.rel (%p317) target = $region48
        $region47: #{tpu_custom_call.1} parent=39 // pred_region
          %s320 = sand.u32 %s24, 1
          %s321 = scalar_lea.sflag [#allocation6], %s320
          %s322 = sand.u32 %s60, 1
          %s323 = smul.addr %s322, 8
          %s324 = scalar_lea.vmem [#allocation5], %s323
          %326 = vsyncadd %s321, 0
          %s327 = smul.addr %s24, 8
          %s328 = scalar_lea.hbm %s1, %s327
          %s330 = sshll.u32 %s328, 4
          %s331 = int_to_ptr.hbm [resolvable:$true] %s330
          %s332 = sshll.u32 %s324, 4
          %s333 = int_to_ptr.vmem [resolvable:$true] %s332
          %335 = dma.hbm_to_vmem [thread:$0]  %s331, 128, %s333, %s321
        $region48: #{tpu_custom_call.1} parent=39 // pred_fallthru
          _
      $region40: #{tpu_custom_call.1} parent=5 // pred_fallthru
        _
      %p336 = scmp.le.s32.totalorder 1, %s24
      %p337 = scmp.lt.s32.totalorder %s24, 3
      %p338 = pnand %p336, %p337
      %p339 = pneg %p338
      // Predicated region
      $region49: #{tpu_custom_call.1} parent=5 // pred_check
        _
      $region50: #{tpu_custom_call.1} parent=5 // pred_check_branch
        %341 = sbr.rel (%p338) target = $region52
      $region51: #{tpu_custom_call.1} parent=5 // pred_region
        %s342 = ssub.s32 %s24, 1
        %s343 = sand.u32 %s37, 1
        %s344 = scalar_lea.sflag [#allocation3], %s343
        %s345 = sand.u32 %s37, 1
        %s346 = smul.addr %s345, 8
        %s347 = scalar_lea.vmem [#allocation2], %s346
        // Predicated region
        $region53: #{tpu_custom_call.1} parent=51 // pred_check
          %p348 = pneg %p50
        $region54: #{tpu_custom_call.1} parent=51 // pred_check_branch
          %350 = sbr.rel (%p348) target = $region56
        $region55: #{tpu_custom_call.1} parent=51 // pred_region
          %352 = dma.done %s344, 128
        $region56: #{tpu_custom_call.1} parent=51 // pred_fallthru
          _
        %s353 = sand.u32 %s29, 1
        %s354 = scalar_lea.sflag [#allocation6], %s353
        %s355 = sand.u32 %s63, 1
        %s356 = smul.addr %s355, 8
        %s357 = scalar_lea.vmem [#allocation5], %s356
        // Predicated region
        $region57: #{tpu_custom_call.1} parent=51 // pred_check
          %p358 = pneg %p76
        $region58: #{tpu_custom_call.1} parent=51 // pred_check_branch
          %360 = sbr.rel (%p358) target = $region60
        $region59: #{tpu_custom_call.1} parent=51 // pred_region
          %362 = dma.done %s354, 128
        $region60: #{tpu_custom_call.1} parent=51 // pred_fallthru
          _
        // Predicated region
        $region61: #{tpu_custom_call.1} parent=51 // pred_check
          %p363 = pneg %p97
        $region62: #{tpu_custom_call.1} parent=51 // pred_check_branch
          %365 = sbr.rel (%p363) target = $region64
        $region63: #{tpu_custom_call.1} parent=51 // pred_region
          %367 = dma.done [#allocation6], 512
        $region64: #{tpu_custom_call.1} parent=51 // pred_fallthru
          _
        // Predicated region
        $region65: #{tpu_custom_call.1} parent=51 // pred_check
          %p368 = pneg %p118
        $region66: #{tpu_custom_call.1} parent=51 // pred_check_branch
          %370 = sbr.rel (%p368) target = $region68
        $region67: #{tpu_custom_call.1} parent=51 // pred_region
          %372 = dma.done [#allocation9], 512
        $region68: #{tpu_custom_call.1} parent=51 // pred_fallthru
          _
        // Predicated region
        $region69: #{tpu_custom_call.1} parent=51 // pred_check
          %p373 = pneg %p181
        $region70: #{tpu_custom_call.1} parent=51 // pred_check_branch
          %375 = sbr.rel (%p373) target = $region72
        $region71: #{tpu_custom_call.1} parent=51 // pred_region
          %377 = dma.done [#allocation9], 512
        $region72: #{tpu_custom_call.1} parent=51 // pred_fallthru
          _
        %s378 = sand.u32 %s37, 1
        %s379 = scalar_lea.sflag [#allocation3], %s378
        %s380 = sand.u32 %s37, 1
        %s381 = smul.addr %s380, 8
        %s382 = scalar_lea.vmem [#allocation2], %s381
        %p383 = pneg %p50
        %p384 = pneg %p47
        %s385 = sand.u32 %s29, 1
        %s386 = scalar_lea.sflag [#allocation6], %s385
        %s387 = sand.u32 %s63, 1
        %s388 = smul.addr %s387, 8
        %s389 = scalar_lea.vmem [#allocation5], %s388
        %p390 = pneg %p76
        %p391 = pneg %p73
        %p392 = pneg %p97
        %p393 = pneg %p94
        %p394 = pneg %p118
        %p395 = pneg %p115
        %p396 = pneg %p139
        %p397 = pneg %p136
        %p398 = pneg %p160
        %p399 = pneg %p157
        %p400 = pneg %p181
        %p401 = pneg %p178
        %p402 = pneg %p202
        %p403 = pneg %p199
        %p404 = pneg %p228
        %p405 = pneg %p225
        %s406 = sand.u32 %s215, 1
        %s407 = scalar_lea.sflag [#allocation4], %s406
        %s408 = sand.u32 %s215, 1
        %s409 = smul.addr %s408, 8
        %s410 = scalar_lea.vmem [#allocation11], %s409
        %v411 = vld [vmem:[%s347] sm:$0xff]
        %v412 = vld [vmem:[%s357] sm:$0xff]
        %v413 = vld [vmem:[#allocation7] sm:$0xff]
        %v414 = vld [vmem:[#allocation7 + $0x8] sm:$0xff]
        %v415 = vld [vmem:[#allocation7 + $0x10] sm:$0xff]
        %v416 = vld [vmem:[#allocation7 + $0x18] sm:$0xff]
        %v417 = vld [vmem:[%s4] sm:$0x1]
        %v419 = vperm.slane %v417, 0
        %vm421 = vcmask 261120
        %v423 = vsel %vm421, %v411, 0
        %425 = vmatpush.msra.mxu0 0.0
        %426 = vmatpush.msra.mxu0 0.0
        %427 = vmatpush.msra.mxu0 0.0
        %428 = vmatpush.msra.mxu0 0.0
        %429 = vmatpush.msra.mxu0 0.0
        %430 = vmatpush.msra.mxu0 0.0
        %431 = vmatpush.msra.mxu0 0.0
        %432 = vmatpush.msra.mxu0 0.0
        %433 = vmatpush.msra.mxu0 0.0
        %434 = vmatpush.msra.mxu0 0.0
        %435 = vmatpush.msra.mxu0 0.0
        %436 = vmatpush.msra.mxu0 0.0
        %437 = vmatpush.msra.mxu0 %v416
        %438 = vmatpush.msra.mxu0 %v415
        %439 = vmatpush.msra.mxu0 %v414
        %440 = vmatpush.msra.mxu0 %v413
        %441 = vmatmul.f32.gmra.mxu0 %v423
        %v442 = vpop.f32.mrf.mxu0
        %v443 = vadd.f32 %v419, %v442
        %444 = vdwg.mxu0
        %v445 = vld [vmem:[#allocation8] sm:$0xff]
        %v446 = vld [vmem:[#allocation8 + $0x8] sm:$0xff]
        %v447 = vld [vmem:[#allocation8 + $0x10] sm:$0xff]
        %v448 = vld [vmem:[#allocation8 + $0x18] sm:$0xff]
        %v449 = vld [vmem:[%s5] sm:$0x1]
        %v451 = vperm.slane %v449, 0
        %v454 = vsel %vm421, %v412, 0
        %456 = vmatpush.msra.mxu0 0.0
        %457 = vmatpush.msra.mxu0 0.0
        %458 = vmatpush.msra.mxu0 0.0
        %459 = vmatpush.msra.mxu0 0.0
        %460 = vmatpush.msra.mxu0 0.0
        %461 = vmatpush.msra.mxu0 0.0
        %462 = vmatpush.msra.mxu0 0.0
        %463 = vmatpush.msra.mxu0 0.0
        %464 = vmatpush.msra.mxu0 0.0
        %465 = vmatpush.msra.mxu0 0.0
        %466 = vmatpush.msra.mxu0 0.0
        %467 = vmatpush.msra.mxu0 0.0
        %468 = vmatpush.msra.mxu0 %v448
        %469 = vmatpush.msra.mxu0 %v447
        %470 = vmatpush.msra.mxu0 %v446
        %471 = vmatpush.msra.mxu0 %v445
        %472 = vmatmul.f32.gmra.mxu0 %v454
        %v473 = vpop.f32.mrf.mxu0
        %v474 = vadd.f32 %v451, %v473
        %475 = vdwg.mxu0
        %vm476 = vcmask 64512
        %v478 = vsel %vm476, %v443, 0
        %v481 = vsel %vm476, %v474, 0
        %483 = vmatpush.xpose.msra.mxu0 0.0
        %484 = vmatpush.xpose.msra.mxu0 0.0
        %485 = vmatpush.xpose.msra.mxu0 0.0
        %486 = vmatpush.xpose.msra.mxu0 0.0
        %487 = vmatpush.xpose.msra.mxu0 0.0
        %488 = vmatpush.xpose.msra.mxu0 0.0
        %489 = vmatpush.xpose.msra.mxu0 0.0
        %490 = vmatpush.xpose.msra.mxu0 0.0
        %491 = vmatpush.xpose.msra.mxu0 0.0
        %492 = vmatpush.xpose.msra.mxu0 0.0
        %493 = vmatpush.xpose.msra.mxu0 0.0
        %494 = vmatpush.xpose.msra.mxu0 0.0
        %495 = vmatpush.xpose.msra.mxu0 0.0
        %496 = vmatpush.xpose.msra.mxu0 0.0
        %497 = vmatpush.xpose.msra.mxu0 0.0
        %498 = vmatpush.xpose.msra.mxu0 %v481
        %499 = vmatmul.f32.gmra.mxu0 %v478
        %v500 = vpop.f32.mrf.mxu0
        %v501 = vadd.f32 0.0, %v500
        %502 = vdwg.mxu0
        %v503 = vsel %vm476, %v501, -inf
        %504 = vmax.xlane.f32.xlu0 %v503
        %v505 = vpop.xlane.xlu0 %504
        %v506 = vsub.f32 %v501, %v505
        %v507 = vmul.f32 %v506, 1.442695
        %v508 = vpow.pop %v507
        %v509 = vsel %vm476, %v508, 0.0
        %510 = vadd.xlane.f32.xlu0 %v509
        %v511 = vpop.xlane.xlu0 %510
        %512 = vrot.lane.b32.xlu0 %v474, 96
        %v513 = vpop.permute.xlu0 %512
        %v516 = vsel %vm476, %v508, 0
        %518 = vmatpush.msra.mxu0 0.0
        %519 = vmatpush.msra.mxu0 0.0
        %520 = vmatpush.msra.mxu0 0.0
        %521 = vmatpush.msra.mxu0 0.0
        %522 = vmatpush.msra.mxu0 0.0
        %523 = vmatpush.msra.mxu0 0.0
        %524 = vmatpush.msra.mxu0 0.0
        %525 = vmatpush.msra.mxu0 0.0
        %526 = vmatpush.msra.mxu0 0.0
        %527 = vmatpush.msra.mxu0 0.0
        %528 = vmatpush.msra.mxu0 0.0
        %529 = vmatpush.msra.mxu0 0.0
        %530 = vmatpush.msra.mxu0 0.0
        %531 = vmatpush.msra.mxu0 0.0
        %532 = vmatpush.msra.mxu0 0.0
        %533 = vmatpush.msra.mxu0 %v513
        %534 = vmatmul.f32.gmra.mxu0 %v516
        %v535 = vpop.f32.mrf.mxu0
        %v536 = vadd.f32 0.0, %v535
        %537 = vdwg.mxu0
        %v538 = vrcp.pop %v511
        %v539 = vmul.f32 %v511, %v538
        %v540 = vsub.f32 1.0, %v539
        %v541 = vmul.f32 %v538, %v540
        %v542 = vadd.f32 %v538, %v541
        %vm543 = vweird.f32 %v511
        %vm544 = vweird.f32 %v538
        %vm545 = vmor %vm543, %vm544
        %v546 = vsel %vm545, %v538, %v542
        %v547 = vand.u32 2147483647, %v511
        %vm548 = vcmp.eq.f32.partialorder %v547, 8.507059e+37
        %v549 = vand.u32 %v511, 2147483648
        %v550 = vor.u32 1.1754944e-38, %v549
        %v551 = vsel %vm548, %v550, %v546
        %v552 = vmul.f32 %v536, %v551
        %553 = vrot.lane.b32.xlu0 %v443, 120
        %v554 = vpop.permute.xlu0 %553
        %555 = vrot.lane.b32.xlu0 %v474, 120
        %v556 = vpop.permute.xlu0 %555
        %v557 = vsel %vm476, %v554, 0
        %v559 = vsel %vm476, %v556, 0
        %561 = vmatpush.xpose.msra.mxu0 0.0
        %562 = vmatpush.xpose.msra.mxu0 0.0
        %563 = vmatpush.xpose.msra.mxu0 0.0
        %564 = vmatpush.xpose.msra.mxu0 0.0
        %565 = vmatpush.xpose.msra.mxu0 0.0
        %566 = vmatpush.xpose.msra.mxu0 0.0
        %567 = vmatpush.xpose.msra.mxu0 0.0
        %568 = vmatpush.xpose.msra.mxu0 0.0
        %569 = vmatpush.xpose.msra.mxu0 0.0
        %570 = vmatpush.xpose.msra.mxu0 0.0
        %571 = vmatpush.xpose.msra.mxu0 0.0
        %572 = vmatpush.xpose.msra.mxu0 0.0
        %573 = vmatpush.xpose.msra.mxu0 0.0
        %574 = vmatpush.xpose.msra.mxu0 0.0
        %575 = vmatpush.xpose.msra.mxu0 0.0
        %576 = vmatpush.xpose.msra.mxu0 %v559
        %577 = vmatmul.f32.gmra.mxu0 %v557
        %v578 = vpop.f32.mrf.mxu0
        %v579 = vadd.f32 0.0, %v578
        %580 = vdwg.mxu0
        %v581 = vsel %vm476, %v579, -inf
        %582 = vmax.xlane.f32.xlu0 %v581
        %v583 = vpop.xlane.xlu0 %582
        %v584 = vsub.f32 %v579, %v583
        %v585 = vmul.f32 %v584, 1.442695
        %v586 = vpow.pop %v585
        %v587 = vsel %vm476, %v586, 0.0
        %588 = vadd.xlane.f32.xlu0 %v587
        %v589 = vpop.xlane.xlu0 %588
        %590 = vrot.lane.b32.xlu0 %v474, 88
        %v591 = vpop.permute.xlu0 %590
        %v594 = vsel %vm476, %v586, 0
        %596 = vmatpush.msra.mxu0 0.0
        %597 = vmatpush.msra.mxu0 0.0
        %598 = vmatpush.msra.mxu0 0.0
        %599 = vmatpush.msra.mxu0 0.0
        %600 = vmatpush.msra.mxu0 0.0
        %601 = vmatpush.msra.mxu0 0.0
        %602 = vmatpush.msra.mxu0 0.0
        %603 = vmatpush.msra.mxu0 0.0
        %604 = vmatpush.msra.mxu0 0.0
        %605 = vmatpush.msra.mxu0 0.0
        %606 = vmatpush.msra.mxu0 0.0
        %607 = vmatpush.msra.mxu0 0.0
        %608 = vmatpush.msra.mxu0 0.0
        %609 = vmatpush.msra.mxu0 0.0
        %610 = vmatpush.msra.mxu0 0.0
        %611 = vmatpush.msra.mxu0 %v591
        %612 = vmatmul.f32.gmra.mxu0 %v594
        %v613 = vpop.f32.mrf.mxu0
        %v614 = vadd.f32 0.0, %v613
        %615 = vdwg.mxu0
        %v616 = vrcp.pop %v589
        %v617 = vmul.f32 %v589, %v616
        %v618 = vsub.f32 1.0, %v617
        %v619 = vmul.f32 %v616, %v618
        %v620 = vadd.f32 %v616, %v619
        %vm621 = vweird.f32 %v589
        %vm622 = vweird.f32 %v616
        %vm623 = vmor %vm621, %vm622
        %v624 = vsel %vm623, %v616, %v620
        %v625 = vand.u32 2147483647, %v589
        %vm626 = vcmp.eq.f32.partialorder %v625, 8.507059e+37
        %v627 = vand.u32 %v589, 2147483648
        %v628 = vor.u32 1.1754944e-38, %v627
        %v629 = vsel %vm626, %v628, %v624
        %v630 = vmul.f32 %v614, %v629
        %631 = vrot.lane.b32.xlu0 %v443, 112
        %v632 = vpop.permute.xlu0 %631
        %633 = vrot.lane.b32.xlu0 %v474, 112
        %v634 = vpop.permute.xlu0 %633
        %v635 = vsel %vm476, %v632, 0
        %v637 = vsel %vm476, %v634, 0
        %639 = vmatpush.xpose.msra.mxu0 0.0
        %640 = vmatpush.xpose.msra.mxu0 0.0
        %641 = vmatpush.xpose.msra.mxu0 0.0
        %642 = vmatpush.xpose.msra.mxu0 0.0
        %643 = vmatpush.xpose.msra.mxu0 0.0
        %644 = vmatpush.xpose.msra.mxu0 0.0
        %645 = vmatpush.xpose.msra.mxu0 0.0
        %646 = vmatpush.xpose.msra.mxu0 0.0
        %647 = vmatpush.xpose.msra.mxu0 0.0
        %648 = vmatpush.xpose.msra.mxu0 0.0
        %649 = vmatpush.xpose.msra.mxu0 0.0
        %650 = vmatpush.xpose.msra.mxu0 0.0
        %651 = vmatpush.xpose.msra.mxu0 0.0
        %652 = vmatpush.xpose.msra.mxu0 0.0
        %653 = vmatpush.xpose.msra.mxu0 0.0
        %654 = vmatpush.xpose.msra.mxu0 %v637
        %655 = vmatmul.f32.gmra.mxu0 %v635
        %v656 = vpop.f32.mrf.mxu0
        %v657 = vadd.f32 0.0, %v656
        %658 = vdwg.mxu0
        %v659 = vsel %vm476, %v657, -inf
        %660 = vmax.xlane.f32.xlu0 %v659
        %v661 = vpop.xlane.xlu0 %660
        %v662 = vsub.f32 %v657, %v661
        %v663 = vmul.f32 %v662, 1.442695
        %v664 = vpow.pop %v663
        %v665 = vsel %vm476, %v664, 0.0
        %666 = vadd.xlane.f32.xlu0 %v665
        %v667 = vpop.xlane.xlu0 %666
        %668 = vrot.lane.b32.xlu0 %v474, 80
        %v669 = vpop.permute.xlu0 %668
        %v672 = vsel %vm476, %v664, 0
        %674 = vmatpush.msra.mxu0 0.0
        %675 = vmatpush.msra.mxu0 0.0
        %676 = vmatpush.msra.mxu0 0.0
        %677 = vmatpush.msra.mxu0 0.0
        %678 = vmatpush.msra.mxu0 0.0
        %679 = vmatpush.msra.mxu0 0.0
        %680 = vmatpush.msra.mxu0 0.0
        %681 = vmatpush.msra.mxu0 0.0
        %682 = vmatpush.msra.mxu0 0.0
        %683 = vmatpush.msra.mxu0 0.0
        %684 = vmatpush.msra.mxu0 0.0
        %685 = vmatpush.msra.mxu0 0.0
        %686 = vmatpush.msra.mxu0 0.0
        %687 = vmatpush.msra.mxu0 0.0
        %688 = vmatpush.msra.mxu0 0.0
        %689 = vmatpush.msra.mxu0 %v669
        %690 = vmatmul.f32.gmra.mxu0 %v672
        %v691 = vpop.f32.mrf.mxu0
        %v692 = vadd.f32 0.0, %v691
        %693 = vdwg.mxu0
        %v694 = vrcp.pop %v667
        %v695 = vmul.f32 %v667, %v694
        %v696 = vsub.f32 1.0, %v695
        %v697 = vmul.f32 %v694, %v696
        %v698 = vadd.f32 %v694, %v697
        %vm699 = vweird.f32 %v667
        %vm700 = vweird.f32 %v694
        %vm701 = vmor %vm699, %vm700
        %v702 = vsel %vm701, %v694, %v698
        %v703 = vand.u32 2147483647, %v667
        %vm704 = vcmp.eq.f32.partialorder %v703, 8.507059e+37
        %v705 = vand.u32 %v667, 2147483648
        %v706 = vor.u32 1.1754944e-38, %v705
        %v707 = vsel %vm704, %v706, %v702
        %v708 = vmul.f32 %v692, %v707
        %709 = vrot.lane.b32.xlu0 %v443, 104
        %v710 = vpop.permute.xlu0 %709
        %711 = vrot.lane.b32.xlu0 %v474, 104
        %v712 = vpop.permute.xlu0 %711
        %v713 = vsel %vm476, %v710, 0
        %v715 = vsel %vm476, %v712, 0
        %717 = vmatpush.xpose.msra.mxu0 0.0
        %718 = vmatpush.xpose.msra.mxu0 0.0
        %719 = vmatpush.xpose.msra.mxu0 0.0
        %720 = vmatpush.xpose.msra.mxu0 0.0
        %721 = vmatpush.xpose.msra.mxu0 0.0
        %722 = vmatpush.xpose.msra.mxu0 0.0
        %723 = vmatpush.xpose.msra.mxu0 0.0
        %724 = vmatpush.xpose.msra.mxu0 0.0
        %725 = vmatpush.xpose.msra.mxu0 0.0
        %726 = vmatpush.xpose.msra.mxu0 0.0
        %727 = vmatpush.xpose.msra.mxu0 0.0
        %728 = vmatpush.xpose.msra.mxu0 0.0
        %729 = vmatpush.xpose.msra.mxu0 0.0
        %730 = vmatpush.xpose.msra.mxu0 0.0
        %731 = vmatpush.xpose.msra.mxu0 0.0
        %732 = vmatpush.xpose.msra.mxu0 %v715
        %733 = vmatmul.f32.gmra.mxu0 %v713
        %v734 = vpop.f32.mrf.mxu0
        %v735 = vadd.f32 0.0, %v734
        %736 = vdwg.mxu0
        %v737 = vsel %vm476, %v735, -inf
        %738 = vmax.xlane.f32.xlu0 %v737
        %v739 = vpop.xlane.xlu0 %738
        %v740 = vsub.f32 %v735, %v739
        %v741 = vmul.f32 %v740, 1.442695
        %v742 = vpow.pop %v741
        %v743 = vsel %vm476, %v742, 0.0
        %744 = vadd.xlane.f32.xlu0 %v743
        %v745 = vpop.xlane.xlu0 %744
        %746 = vrot.lane.b32.xlu0 %v474, 72
        %v747 = vpop.permute.xlu0 %746
        %v750 = vsel %vm476, %v742, 0
        %752 = vmatpush.msra.mxu0 0.0
        %753 = vmatpush.msra.mxu0 0.0
        %754 = vmatpush.msra.mxu0 0.0
        %755 = vmatpush.msra.mxu0 0.0
        %756 = vmatpush.msra.mxu0 0.0
        %757 = vmatpush.msra.mxu0 0.0
        %758 = vmatpush.msra.mxu0 0.0
        %759 = vmatpush.msra.mxu0 0.0
        %760 = vmatpush.msra.mxu0 0.0
        %761 = vmatpush.msra.mxu0 0.0
        %762 = vmatpush.msra.mxu0 0.0
        %763 = vmatpush.msra.mxu0 0.0
        %764 = vmatpush.msra.mxu0 0.0
        %765 = vmatpush.msra.mxu0 0.0
        %766 = vmatpush.msra.mxu0 0.0
        %767 = vmatpush.msra.mxu0 %v747
        %768 = vmatmul.f32.gmra.mxu0 %v750
        %v769 = vpop.f32.mrf.mxu0
        %v770 = vadd.f32 0.0, %v769
        %771 = vdwg.mxu0
        %v772 = vrcp.pop %v745
        %v773 = vmul.f32 %v745, %v772
        %v774 = vsub.f32 1.0, %v773
        %v775 = vmul.f32 %v772, %v774
        %v776 = vadd.f32 %v772, %v775
        %vm777 = vweird.f32 %v745
        %vm778 = vweird.f32 %v772
        %vm779 = vmor %vm777, %vm778
        %v780 = vsel %vm779, %v772, %v776
        %v781 = vand.u32 2147483647, %v745
        %vm782 = vcmp.eq.f32.partialorder %v781, 8.507059e+37
        %v783 = vand.u32 %v745, 2147483648
        %v784 = vor.u32 1.1754944e-38, %v783
        %v785 = vsel %vm782, %v784, %v780
        %v786 = vmul.f32 %v770, %v785
        %788 = vrot.lane.b32.xlu0 %v630, 8
        %v789 = vpop.permute.xlu0 %788
        %792 = vrot.lane.b32.xlu0 %v708, 16
        %v793 = vpop.permute.xlu0 %792
        %796 = vrot.lane.b32.xlu0 %v786, 24
        %v797 = vpop.permute.xlu0 %796
        %v799 = vsel %vm476, %v552, %v789
        %vm800 = vcmask 130048
        %v801 = vsel %vm800, %v799, %v793
        %vm802 = vcmask 195584
        %v803 = vsel %vm802, %v801, %v797
        %v804 = vld [vmem:[#allocation10] sm:$0xff]
        %v805 = vld [vmem:[#allocation10 + $0x8] sm:$0xff]
        %v806 = vld [vmem:[#allocation10 + $0x10] sm:$0xff]
        %v807 = vld [vmem:[#allocation10 + $0x18] sm:$0xff]
        %v808 = vld [vmem:[%s7] sm:$0x1]
        %v810 = vperm.slane %v808, 0
        %v813 = vsel %vm421, %v803, 0
        %815 = vmatpush.msra.mxu0 0.0
        %816 = vmatpush.msra.mxu0 0.0
        %817 = vmatpush.msra.mxu0 0.0
        %818 = vmatpush.msra.mxu0 0.0
        %819 = vmatpush.msra.mxu0 0.0
        %820 = vmatpush.msra.mxu0 0.0
        %821 = vmatpush.msra.mxu0 0.0
        %822 = vmatpush.msra.mxu0 0.0
        %823 = vmatpush.msra.mxu0 0.0
        %824 = vmatpush.msra.mxu0 0.0
        %825 = vmatpush.msra.mxu0 0.0
        %826 = vmatpush.msra.mxu0 0.0
        %827 = vmatpush.msra.mxu0 %v807
        %828 = vmatpush.msra.mxu0 %v806
        %829 = vmatpush.msra.mxu0 %v805
        %830 = vmatpush.msra.mxu0 %v804
        %831 = vmatmul.f32.gmra.mxu0 %v813
        %v832 = vpop.f32.mrf.mxu0
        %v833 = vadd.f32 %v810, %v832
        %834 = vdwg.mxu0
        %v835 = vadd.f32 %v411, %v833
        %836 = vst.msk [vmem:[%s410] sm:$0xff] %vm421, %v835
        %s837 = sand.u32 %s215, 1
        %s838 = scalar_lea.sflag [#allocation4], %s837
        %s839 = sand.u32 %s215, 1
        %s840 = smul.addr %s839, 8
        %s841 = scalar_lea.vmem [#allocation11], %s840
        // Predicated region
        $region73: #{tpu_custom_call.1} parent=51 // pred_check
          %p842 = pneg %p225
        $region74: #{tpu_custom_call.1} parent=51 // pred_check_branch
          %844 = sbr.rel (%p842) target = $region76
        $region75: #{tpu_custom_call.1} parent=51 // pred_region
          %846 = vsyncadd %s838, 0
          %s847 = smul.addr %s29, 8
          %s848 = scalar_lea.hbm %s8, %s847
          %s850 = sshll.u32 %s841, 4
          %s851 = int_to_ptr.vmem [resolvable:$true] %s850
          %s852 = sshll.u32 %s848, 4
          %s853 = int_to_ptr.hbm [resolvable:$true] %s852
          %855 = dma.vmem_to_hbm [thread:$0]  %s851, 128, %s853, %s838
        $region76: #{tpu_custom_call.1} parent=51 // pred_fallthru
          _
      $region52: #{tpu_custom_call.1} parent=5 // pred_fallthru
        _
      %p856 = scmp.le.s32.totalorder 2, %s24
      // Predicated region
      $region77: #{tpu_custom_call.1} parent=5 // pred_check
        %p857 = pneg %p856
      $region78: #{tpu_custom_call.1} parent=5 // pred_check_branch
        %859 = sbr.rel (%p857) target = $region80
      $region79: #{tpu_custom_call.1} parent=5 // pred_region
        %s860 = ssub.s32 %s24, 2
        // Predicated region
        $region81: #{tpu_custom_call.1} parent=79 // pred_check
          %p861 = pneg %p231
        $region82: #{tpu_custom_call.1} parent=79 // pred_check_branch
          %863 = sbr.rel (%p861) target = $region84
        $region83: #{tpu_custom_call.1} parent=79 // pred_region
          %s864 = sand.u32 %s216, 1
          %s865 = scalar_lea.sflag [#allocation4], %s864
          %s866 = sand.u32 %s216, 1
          %s867 = smul.addr %s866, 8
          %s868 = scalar_lea.vmem [#allocation11], %s867
          %870 = dma.done %s865, 128
        $region84: #{tpu_custom_call.1} parent=79 // pred_fallthru
          _
      $region80: #{tpu_custom_call.1} parent=5 // pred_fallthru
        _
    $region6: #{tpu_custom_call.1} parent=1 // loop_footer
      %s28 = sadd.s32 1, %s24
    $region7: #{tpu_custom_call.1} parent=1 // loop_footer_branch
      %23 = sbr.rel target = $region3
    $region8: #{tpu_custom_call.1} parent=1 // loop_exit
      _
    %871 = vsyncpa [#allocation3], 1
    %s872 = scalar_lea.sflag [#allocation3], 1
    %873 = vsyncpa %s872, 1
    %874 = vsyncpa [#allocation6], 1
    %s875 = scalar_lea.sflag [#allocation6], 1
    %876 = vsyncpa %s875, 1
    %877 = vsyncpa [#allocation9], 1
    %878 = vsyncpa [#allocation4], 1
    %s879 = scalar_lea.sflag [#allocation4], 1
    %880 = vsyncpa %s879, 1

</llo_original>
